<compile_context>
chip_gen: v7x
topology: tpu7x:2x2x1
jax: 0.10.0
libtpu: 0.0.40
codegen_flags: <defaults>
</compile_context>

<pallas_src>
import math
import functools

import jax
import jax.numpy as jnp
from jax import lax
from jax.experimental import pallas as pl
from jax.experimental.pallas import tpu as pltpu

LOG2PI = float(math.log(2.0 * math.pi))


# --------------------------------------------------------------------------- #
# In-kernel construction of the banded 2D averaging matrix P [HW, HW]:
#   P[(i, j), (h, w)] = 1/K^2  iff |i - h| <= pad and |j - w| <= pad, else 0.
# Then  avg_pool2d(x, K, 1, pad)  ==  x_flat @ P  with x_flat = x.reshape(C, HW).
# Built from 2D iotas (bit ops only; W must be a power of two).
# --------------------------------------------------------------------------- #
def _band_pool_matrix(H, W, pad, ksize):
    HW = H * W
    shift = int(round(math.log2(W)))
    r = lax.broadcasted_iota(jnp.int32, (HW, HW), 0)   # input flat index
    c = lax.broadcasted_iota(jnp.int32, (HW, HW), 1)   # output flat index
    rh, rw = r >> shift, r & (W - 1)
    ch, cw = c >> shift, c & (W - 1)
    band = (jnp.abs(rh - ch) <= pad) & (jnp.abs(rw - cw) <= pad)
    return band.astype(jnp.float32) * (1.0 / float(ksize * ksize))


# --------------------------------------------------------------------------- #
# Fused normal_flow kernel (one grid step per batch element):
#   mean    = avg_pool2d(gt / (gt.sum(ch) + 1e-4), 7, 1, 3)       (MXU matmul)
#   z       = gt + (noise - 0.5) / quant                          (add_gt_noise)
#   logp    = sum -0.5 * ((z - mean)^2 + log(2*pi))               (logs = 0)
#   nll     = -(logdet_const + logp) / (log(2) * pixels)
# --------------------------------------------------------------------------- #
def _normal_flow_kernel(gt_ref, noise_ref, z_ref, nll_ref, *,
                        H, W, pad, ksize, quant, add_gt_noise, eps):
    HW = H * W
    x = gt_ref[0]                                            # [C, HW] f32
    C = x.shape[0]

    # channel-normalize (EUP reciprocal), then 7x7 avg-pool via banded matmul
    csum = jnp.sum(x, axis=0, keepdims=True)                 # [1, HW]
    xn = x * pl.reciprocal(csum + eps, approx=True)          # [C, HW]
    P = _band_pool_matrix(H, W, pad, ksize)                  # [HW, HW] (VMEM temp)
    mean = jnp.dot(xn, P, preferred_element_type=jnp.float32)  # [C, HW]

    if add_gt_noise:
        z = x + (noise_ref[0] - 0.5) * (1.0 / float(quant))
        logdet0 = float(-math.log(float(quant)) * HW)
    else:
        z = x
        logdet0 = 0.0

    # TODO(synk): FlowUpsamplerNet(z) applied here in the reference; identity stub.
    diff = z - mean
    sq = diff * diff
    s = jnp.sum(jnp.sum(sq, axis=1, keepdims=True), axis=0, keepdims=True)  # [1,1]
    logp = -0.5 * (s + float(C * HW) * LOG2PI)               # fold const analytically
    nll = -(logp + logdet0) * (1.0 / float(math.log(2.0) * HW))

    z_ref[0] = z
    nll_ref[...] = jnp.broadcast_to(nll, nll_ref.shape)      # lane-dense [1,1,128] slab


def normal_flow(gt, lr, noise, *, quant=255, add_gt_noise=True):
    """Mirrors LLFlowVQGAN2.normal_flow (avg_color_map / gt-branch config).
    Returns (z, nll, logdet) with shapes ([B,C,H,W], [B], [B])."""
    del lr  # TODO(synk): lr feeds ConEncoder1/RRDB -> FlowUpsamplerNet (stubbed)
    B, C, H, W = gt.shape
    assert (W & (W - 1)) == 0, "W must be a power of two (flat-index decode)"
    HW = H * W

    gt_f = gt.reshape(B, C, HW).astype(jnp.float32)       # contiguous reshape: free
    noise_f = noise.reshape(B, C, HW).astype(jnp.float32)

    kernel = functools.partial(_normal_flow_kernel, H=H, W=W, pad=3, ksize=7,
                               quant=quant, add_gt_noise=add_gt_noise, eps=1e-4)
    z_f, nll_slab = pl.pallas_call(
        kernel,
        out_shape=(jax.ShapeDtypeStruct((B, C, HW), jnp.float32),
                   jax.ShapeDtypeStruct((B, 1, 128), jnp.float32)),
        grid=(B,),
        in_specs=[pl.BlockSpec((1, C, HW), lambda b: (b, 0, 0)),
                  pl.BlockSpec((1, C, HW), lambda b: (b, 0, 0))],
        out_specs=(pl.BlockSpec((1, C, HW), lambda b: (b, 0, 0)),
                   pl.BlockSpec((1, 1, 128), lambda b: (b, 0, 0))),
        compiler_params=pltpu.CompilerParams(dimension_semantics=("parallel",)),
    )(gt_f, noise_f)

    z = z_f.reshape(B, C, H, W)
    nll = nll_slab[:, 0, 0]
    logdet_const = (-math.log(float(quant)) * HW) if add_gt_noise else 0.0
    logdet = jnp.full((B,), logdet_const, dtype=jnp.float32)   # compile-time constant
    return z, nll, logdet


# --------------------------------------------------------------------------- #
# get_color_map (color_gt half):
#   color_gt = avg_pool2d(gt, 11, 1, 5);  color_gt /= color_gt.sum(ch)
# TODO(synk): color_lr = self.color_map_encoder(lr) is an undefined submodule.
# --------------------------------------------------------------------------- #
def _color_map_kernel(gt_ref, out_ref, *, H, W, pad, ksize, eps):
    x = gt_ref[0]                                            # [C, HW]
    P = _band_pool_matrix(H, W, pad, ksize)
    pooled = jnp.dot(x, P, preferred_element_type=jnp.float32)
    csum = jnp.sum(pooled, axis=0, keepdims=True)            # [1, HW]
    den = csum if eps == 0.0 else csum + eps
    out_ref[0] = pooled * pl.reciprocal(den, approx=True)


def get_color_map_gt(gt, *, eps=0.0):
    # eps=0.0 matches the PyTorch reference exactly (0/0 -> NaN on empty windows).
    B, C, H, W = gt.shape
    assert (W & (W - 1)) == 0
    HW = H * W
    gt_f = gt.reshape(B, C, HW).astype(jnp.float32)
    kernel = functools.partial(_color_map_kernel, H=H, W=W, pad=5, ksize=11, eps=eps)
    out = pl.pallas_call(
        kernel,
        out_shape=jax.ShapeDtypeStruct((B, C, HW), jnp.float32),
        grid=(B,),
        in_specs=[pl.BlockSpec((1, C, HW), lambda b: (b, 0, 0))],
        out_specs=pl.BlockSpec((1, C, HW), lambda b: (b, 0, 0)),
        compiler_params=pltpu.CompilerParams(dimension_semantics=("parallel",)),
    )(gt_f)
    return out.reshape(B, C, H, W)


# --------------------------------------------------------------------------- #
# Plain-JAX reference (independent stencil formulation) for correctness checks.
# --------------------------------------------------------------------------- #
def _ref_pool(x, ksize, pad):
    xp = jnp.pad(x, ((0, 0), (0, 0), (pad, pad), (pad, pad)))
    B, C, H, W = x.shape
    acc = jnp.zeros_like(x)
    for dh in range(ksize):
        for dw in range(ksize):
            acc = acc + xp[:, :, dh:dh + H, dw:dw + W]
    return acc / float(ksize * ksize)


def _ref_normal_flow(gt, noise, quant=255):
    B, C, H, W = gt.shape
    pixels = H * W
    xn = gt / (jnp.sum(gt, axis=1, keepdims=True) + 1e-4)
    mean = _ref_pool(xn, 7, 3)
    z = gt + (noise - 0.5) / float(quant)
    logdet = jnp.full((B,), -math.log(float(quant)) * pixels, jnp.float32)
    ll = -0.5 * ((z - mean) ** 2 + LOG2PI)
    logp = jnp.sum(ll, axis=(1, 2, 3))
    nll = -(logdet + logp) / float(math.log(2.0) * pixels)
    return z, nll, logdet


def _ref_color_map_gt(gt):
    pooled = _ref_pool(gt, 11, 5)
    return pooled / jnp.sum(pooled, axis=1, keepdims=True)


# --------------------------------------------------------------------------- #
if __name__ == "__main__":
    key = jax.random.PRNGKey(0)
    k_gt, k_lr, k_noise = jax.random.split(key, 3)

    B, C, H, W = 2, 3, 16, 16
    gt = jax.random.uniform(k_gt, (B, C, H, W), dtype=jnp.float32)
    lr = jax.random.uniform(k_lr, (B, C, H, W), dtype=jnp.float32)
    noise = jax.random.uniform(k_noise, (B, C, H, W), dtype=jnp.float32)

    # normal_flow (reverse=False training path)
    z, nll, logdet = normal_flow(gt, lr, noise, quant=255, add_gt_noise=True)
    # get_color_map path (color_gt half)
    color_gt = get_color_map_gt(gt)
    jax.block_until_ready((z, nll, logdet, color_gt))

    # correctness vs. plain-JAX reference.  Tolerances for mean/color-dependent
    # outputs account for the approximate EUP reciprocal and MXU rounding.
    z_r, nll_r, logdet_r = _ref_normal_flow(gt, noise)
    cg_r = _ref_color_map_gt(gt)
    assert jnp.allclose(z, z_r, rtol=1e-5, atol=1e-5)
    assert jnp.allclose(nll, nll_r, rtol=1e-3, atol=1e-3)
    assert jnp.allclose(logdet, logdet_r, rtol=1e-6, atol=1e-3)
    assert jnp.allclose(color_gt, cg_r, rtol=1e-2, atol=1e-3)

    print("KERNEL_OK")
</pallas_src>

<mosaic_0001>
module attributes {stable_mosaic.version = 11 : i64} {
  func.func @_normal_flow_kernel(%arg0: i32, %arg1: memref<1x3x256xf32, #tpu.memory_space<vmem>>, %arg2: memref<1x3x256xf32, #tpu.memory_space<vmem>>, %arg3: memref<1x3x256xf32, #tpu.memory_space<vmem>>, %arg4: memref<1x1x128xf32, #tpu.memory_space<vmem>>) attributes {dimension_semantics = [#tpu.dimension_semantics<parallel>], iteration_bounds = array<i64: 2>, scalar_prefetch = 0 : i64, scratch_operands = 0 : i64, tpu.core_type = #tpu.core_type<tc>, window_params = [{transform_indices = @transform_0, window_bounds = array<i64: 1, 3, 256>}, {transform_indices = @transform_1, window_bounds = array<i64: 1, 3, 256>}, {transform_indices = @transform_2, window_bounds = array<i64: 1, 3, 256>}, {transform_indices = @transform_3, window_bounds = array<i64: 1, 1, 128>}]} {
    %c0 = arith.constant 0 : index
    %c0_0 = arith.constant 0 : index
    %c0_1 = arith.constant 0 : index
    %0 = vector.load %arg1[%c0, %c0_0, %c0_1] : memref<1x3x256xf32, #tpu.memory_space<vmem>>, vector<1x3x256xf32>
    %1 = vector.shape_cast %0 : vector<1x3x256xf32> to vector<3x256xf32>
    %cst = arith.constant dense<0.000000e+00> : vector<256xf32>
    %2 = vector.multi_reduction <add>, %1, %cst [0] : vector<3x256xf32> to vector<256xf32>
    %3 = vector.shape_cast %2 : vector<256xf32> to vector<1x256xf32>
    %cst_2 = arith.constant 9.99999974E-5 : f32
    %4 = vector.broadcast %cst_2 : f32 to vector<1x256xf32>
    %5 = arith.addf %3, %4 : vector<1x256xf32>
    %6 = tpu.reciprocal %5 {approx = true} : vector<1x256xf32> -> vector<1x256xf32>
    %7 = vector.broadcast %6 : vector<1x256xf32> to vector<3x256xf32>
    %8 = arith.mulf %1, %7 : vector<3x256xf32>
    %9 = tpu.iota {dimensions = array<i32: 0>} : vector<256x256xi32>
    %10 = tpu.iota {dimensions = array<i32: 1>} : vector<256x256xi32>
    %c4_i32 = arith.constant 4 : i32
    %11 = vector.broadcast %c4_i32 : i32 to vector<256x256xi32>
    %12 = arith.shrsi %9, %11 : vector<256x256xi32>
    %c15_i32 = arith.constant 15 : i32
    %13 = vector.broadcast %c15_i32 : i32 to vector<256x256xi32>
    %14 = arith.andi %9, %13 : vector<256x256xi32>
    %c4_i32_3 = arith.constant 4 : i32
    %15 = vector.broadcast %c4_i32_3 : i32 to vector<256x256xi32>
    %16 = arith.shrsi %10, %15 : vector<256x256xi32>
    %c15_i32_4 = arith.constant 15 : i32
    %17 = vector.broadcast %c15_i32_4 : i32 to vector<256x256xi32>
    %18 = arith.andi %10, %17 : vector<256x256xi32>
    %19 = arith.subi %12, %16 : vector<256x256xi32>
    %20 = math.absi %19 : vector<256x256xi32>
    %c3_i32 = arith.constant 3 : i32
    %21 = vector.broadcast %c3_i32 : i32 to vector<256x256xi32>
    %22 = arith.cmpi sle, %20, %21 : vector<256x256xi32>
    %23 = arith.subi %14, %18 : vector<256x256xi32>
    %24 = math.absi %23 : vector<256x256xi32>
    %c3_i32_5 = arith.constant 3 : i32
    %25 = vector.broadcast %c3_i32_5 : i32 to vector<256x256xi32>
    %26 = arith.cmpi sle, %24, %25 : vector<256x256xi32>
    %27 = arith.andi %22, %26 : vector<256x256xi1>
    %28 = arith.extui %27 : vector<256x256xi1> to vector<256x256xi32>
    %29 = arith.sitofp %28 : vector<256x256xi32> to vector<256x256xf32>
    %cst_6 = arith.constant 0.0204081628 : f32
    %30 = vector.broadcast %cst_6 : f32 to vector<256x256xf32>
    %31 = arith.mulf %29, %30 : vector<256x256xf32>
    %cst_7 = arith.constant dense<0.000000e+00> : vector<3x256xf32>
    %32 = tpu.matmul %8, %31, %cst_7 {dimension_numbers = #tpu.dot_dimension_numbers<[1], [0], [0], [1], [0, 0, 1, 1], [], []>} : vector<3x256xf32>, vector<256x256xf32>, vector<3x256xf32> -> vector<3x256xf32>
    %c0_8 = arith.constant 0 : index
    %c0_9 = arith.constant 0 : index
    %c0_10 = arith.constant 0 : index
    %33 = vector.load %arg2[%c0_8, %c0_9, %c0_10] : memref<1x3x256xf32, #tpu.memory_space<vmem>>, vector<1x3x256xf32>
    %34 = vector.shape_cast %33 : vector<1x3x256xf32> to vector<3x256xf32>
    %cst_11 = arith.constant 5.000000e-01 : f32
    %35 = vector.broadcast %cst_11 : f32 to vector<3x256xf32>
    %36 = arith.subf %34, %35 : vector<3x256xf32>
    %cst_12 = arith.constant 0.00392156886 : f32
    %37 = vector.broadcast %cst_12 : f32 to vector<3x256xf32>
    %38 = arith.mulf %36, %37 : vector<3x256xf32>
    %39 = arith.addf %1, %38 : vector<3x256xf32>
    %40 = arith.subf %39, %32 : vector<3x256xf32>
    %41 = arith.mulf %40, %40 : vector<3x256xf32>
    %cst_13 = arith.constant dense<0.000000e+00> : vector<3xf32>
    %42 = vector.multi_reduction <add>, %41, %cst_13 [1] : vector<3x256xf32> to vector<3xf32>
    %43 = vector.shape_cast %42 : vector<3xf32> to vector<3x1xf32>
    %cst_14 = arith.constant dense<0.000000e+00> : vector<1xf32>
    %44 = vector.multi_reduction <add>, %43, %cst_14 [0] : vector<3x1xf32> to vector<1xf32>
    %45 = vector.shape_cast %44 : vector<1xf32> to vector<1x1xf32>
    %cst_15 = arith.constant 1411.48962 : f32
    %46 = vector.broadcast %cst_15 : f32 to vector<1x1xf32>
    %47 = arith.addf %45, %46 : vector<1x1xf32>
    %cst_16 = arith.constant -5.000000e-01 : f32
    %48 = vector.broadcast %cst_16 : f32 to vector<1x1xf32>
    %49 = arith.mulf %48, %47 : vector<1x1xf32>
    %cst_17 = arith.constant -1418.56348 : f32
    %50 = vector.broadcast %cst_17 : f32 to vector<1x1xf32>
    %51 = arith.addf %49, %50 : vector<1x1xf32>
    %cst_18 = arith.constant 0.000000e+00 : f32
    %52 = vector.broadcast %cst_18 : f32 to vector<1x1xf32>
    %53 = arith.subf %52, %51 : vector<1x1xf32>
    %cst_19 = arith.constant 0.00563552743 : f32
    %54 = vector.broadcast %cst_19 : f32 to vector<1x1xf32>
    %55 = arith.mulf %53, %54 : vector<1x1xf32>
    %c0_20 = arith.constant 0 : index
    %c0_21 = arith.constant 0 : index
    %c0_22 = arith.constant 0 : index
    %56 = vector.load %arg3[%c0_20, %c0_21, %c0_22] : memref<1x3x256xf32, #tpu.memory_space<vmem>>, vector<1x3x256xf32>
    %57 = vector.shape_cast %56 : vector<1x3x256xf32> to vector<3x256xf32>
    %58 = vector.shape_cast %39 : vector<3x256xf32> to vector<1x3x256xf32>
    tpu.vector_store %arg3[%c0_20, %c0_21, %c0_22], %58 {strides = array<i32>} : memref<1x3x256xf32, #tpu.memory_space<vmem>>, vector<1x3x256xf32>,
    %59 = vector.shape_cast %55 : vector<1x1xf32> to vector<1x1x1xf32>
    %60 = vector.broadcast %59 : vector<1x1x1xf32> to vector<1x1x128xf32>
    %c0_23 = arith.constant 0 : index
    %c0_24 = arith.constant 0 : index
    %c0_25 = arith.constant 0 : index
    %61 = vector.load %arg4[%c0_23, %c0_24, %c0_25] : memref<1x1x128xf32, #tpu.memory_space<vmem>>, vector<1x1x128xf32>
    tpu.vector_store %arg4[%c0_23, %c0_24, %c0_25], %60 {strides = array<i32>} : memref<1x1x128xf32, #tpu.memory_space<vmem>>, vector<1x1x128xf32>,
    return
  }
  func.func @transform_0(%arg0: i32) -> (i32, i32, i32) {
    %c0_i32 = arith.constant 0 : i32
    %c0_i32_0 = arith.constant 0 : i32
    %c0_i32_1 = arith.constant 0 : i32
    return %arg0, %c0_i32, %c0_i32_0 : i32, i32, i32
  }
  func.func @transform_1(%arg0: i32) -> (i32, i32, i32) {
    %c0_i32 = arith.constant 0 : i32
    %c0_i32_0 = arith.constant 0 : i32
    %c0_i32_1 = arith.constant 0 : i32
    return %arg0, %c0_i32, %c0_i32_0 : i32, i32, i32
  }
  func.func @transform_2(%arg0: i32) -> (i32, i32, i32) {
    %c0_i32 = arith.constant 0 : i32
    %c0_i32_0 = arith.constant 0 : i32
    %c0_i32_1 = arith.constant 0 : i32
    return %arg0, %c0_i32, %c0_i32_0 : i32, i32, i32
  }
  func.func @transform_3(%arg0: i32) -> (i32, i32, i32) {
    %c0_i32 = arith.constant 0 : i32
    %c0_i32_0 = arith.constant 0 : i32
    %c0_i32_1 = arith.constant 0 : i32
    return %arg0, %c0_i32, %c0_i32_0 : i32, i32, i32
  }
}

</mosaic_0001>

<llo_original>
// kernel: tpu_custom_call.1
$region0: #{tpu_custom_call.1}
  #allocation0 [shape = 'u32[]', space=smem, size = 0x4, offset = 0x4, fixed_abs, tag = 'smem constant byte address 0x4 - core index']
  #allocation1 [shape = 'u32[144,128]{1,0:T(1,128)}', space=vmem, size = 0x12000, scoped, tag = 'internal scratch']
  %s0 = inlined_call_operand.vmem [shape: f32[2,3,256], index: 0, kind: input, shape index: {}]
  %s1 = inlined_call_operand.vmem [shape: f32[2,3,256], index: 1, kind: input, shape index: {}]
  %s2 = inlined_call_operand.vmem [shape: f32[2,3,256], index: 2, kind: output, shape index: {0}]
  %s3 = inlined_call_operand.hbm [shape: f32[2,1,128], index: 3, kind: output, shape index: {1}]
  %4 = xla_tuple %s2, %s3
  %s5 = sld [smem:[#allocation0]]
  $region49: #{tpu_custom_call.1} parent=0
    _
  %s7 = ssub.s32 1, %s5
  %s8 = scalar_select 0, %s7, %s5
  $region1: #{tpu_custom_call.1} parent=0
    #allocation2 [shape = 'u8[1024]{0}', space=vmem, size = 0x400, scoped, tag = 'output window, operand 1']
    #allocation3 [shape = 's32[2]{0}', space=sflag, size = 0x8, scoped, tag = 'scoped memory for tpu_custom_call.1']
    %9 = vsyncpa [#allocation3], 0
    %s10 = scalar_lea.sflag [#allocation3], 1
    %11 = vsyncpa %s10, 0
    loop: start=0, step=1, limit=4
    $region2: #{tpu_custom_call.1} parent=1 // loop_pre_header
      _
    $region3: #{tpu_custom_call.1} parent=1 // loop_header
      %s13 = sphi 0, %s17
      %p14 = scmp.ge.s32.totalorder %s13, 4
      %s23 = sphi 0, %s25
      %s26 = sphi 0, %s23
      %s27 = sphi 0, %s26
      %s43 = sphi 0, %s27
      %s49 = sphi 0, %s51
      %s52 = sphi 0, %s49
      %s53 = sphi 0, %s52
      %s69 = sphi 0, %s53
      %s75 = sphi 0, %s77
      %s78 = sphi 0, %s75
      %s79 = sphi 0, %s78
      %s95 = sphi 0, %s79
      %s101 = sphi 0, %s103
      %s104 = sphi 0, %s101
      %s105 = sphi 0, %s104
      %s121 = sphi 0, %s105
    $region4: #{tpu_custom_call.1} parent=1 // loop_header_branch
      %16 = sbr.rel (%p14) target = $region8
    $region5: #{tpu_custom_call.1} parent=1 // loop_body
      %s18 = ssub.s32 %s13, 1
      %s19 = ssub.s32 %s13, 2
      %s20 = sadd.s32 %s13, 1
      %s21 = ssub.s32 %s13, %s20
      %p22 = scmp.eq.s32.totalorder %s21, 0
      %s24 = sadd.s32 %s23, 1
      %s25 = scalar_select %p22, %s23, %s24
      %p28 = pneg %p22
      %p29 = scmp.eq.s32.totalorder %s13, 1
      %p30 = por %p28, %p29
      %p31 = scmp.ne.s32.totalorder %s23, %s26
      %p32 = scmp.eq.s32.totalorder %s13, 0
      %p33 = por %p31, %p32
      %p34 = scmp.ne.s32.totalorder %s23, %s26
      %p35 = scmp.eq.s32.totalorder %s18, 1
      %p36 = por %p34, %p35
      %p37 = scmp.ne.s32.totalorder %s26, %s27
      %p38 = scmp.eq.s32.totalorder %s18, 0
      %p39 = por %p37, %p38
      %p40 = scmp.ne.s32.totalorder %s26, %s27
      %p41 = scmp.eq.s32.totalorder %s19, 1
      %p42 = por %p40, %p41
      %p44 = scmp.ne.s32.totalorder %s27, %s43
      %p45 = scmp.eq.s32.totalorder %s19, 0
      %p46 = por %p44, %p45
      %s47 = ssub.s32 %s13, %s20
      %p48 = scmp.eq.s32.totalorder %s47, 0
      %s50 = sadd.s32 %s49, 1
      %s51 = scalar_select %p48, %s49, %s50
      %p54 = pneg %p48
      %p55 = scmp.eq.s32.totalorder %s13, 1
      %p56 = por %p54, %p55
      %p57 = scmp.ne.s32.totalorder %s49, %s52
      %p58 = scmp.eq.s32.totalorder %s13, 0
      %p59 = por %p57, %p58
      %p60 = scmp.ne.s32.totalorder %s49, %s52
      %p61 = scmp.eq.s32.totalorder %s18, 1
      %p62 = por %p60, %p61
      %p63 = scmp.ne.s32.totalorder %s52, %s53
      %p64 = scmp.eq.s32.totalorder %s18, 0
      %p65 = por %p63, %p64
      %p66 = scmp.ne.s32.totalorder %s52, %s53
      %p67 = scmp.eq.s32.totalorder %s19, 1
      %p68 = por %p66, %p67
      %p70 = scmp.ne.s32.totalorder %s53, %s69
      %p71 = scmp.eq.s32.totalorder %s19, 0
      %p72 = por %p70, %p71
      %s73 = ssub.s32 %s13, %s20
      %p74 = scmp.eq.s32.totalorder %s73, 0
      %s76 = sadd.s32 %s75, 1
      %s77 = scalar_select %p74, %s75, %s76
      %p80 = pneg %p74
      %p81 = scmp.eq.s32.totalorder %s13, 1
      %p82 = por %p80, %p81
      %p83 = scmp.ne.s32.totalorder %s75, %s78
      %p84 = scmp.eq.s32.totalorder %s13, 0
      %p85 = por %p83, %p84
      %p86 = scmp.ne.s32.totalorder %s75, %s78
      %p87 = scmp.eq.s32.totalorder %s18, 1
      %p88 = por %p86, %p87
      %p89 = scmp.ne.s32.totalorder %s78, %s79
      %p90 = scmp.eq.s32.totalorder %s18, 0
      %p91 = por %p89, %p90
      %p92 = scmp.ne.s32.totalorder %s78, %s79
      %p93 = scmp.eq.s32.totalorder %s19, 1
      %p94 = por %p92, %p93
      %p96 = scmp.ne.s32.totalorder %s79, %s95
      %p97 = scmp.eq.s32.totalorder %s19, 0
      %p98 = por %p96, %p97
      %s99 = ssub.s32 %s13, %s20
      %p100 = scmp.eq.s32.totalorder %s99, 0
      %s102 = sadd.s32 %s101, 1
      %s103 = scalar_select %p100, %s101, %s102
      %p106 = pneg %p100
      %p107 = scmp.eq.s32.totalorder %s13, 1
      %p108 = por %p106, %p107
      %p109 = scmp.ne.s32.totalorder %s101, %s104
      %p110 = scmp.eq.s32.totalorder %s13, 0
      %p111 = por %p109, %p110
      %p112 = scmp.ne.s32.totalorder %s101, %s104
      %p113 = scmp.eq.s32.totalorder %s18, 1
      %p114 = por %p112, %p113
      %p115 = scmp.ne.s32.totalorder %s104, %s105
      %p116 = scmp.eq.s32.totalorder %s18, 0
      %p117 = por %p115, %p116
      %p118 = scmp.ne.s32.totalorder %s104, %s105
      %p119 = scmp.eq.s32.totalorder %s19, 1
      %p120 = por %p118, %p119
      %p122 = scmp.ne.s32.totalorder %s105, %s121
      %p123 = scmp.eq.s32.totalorder %s19, 0
      %p124 = por %p122, %p123
      %p125 = scmp.le.s32.totalorder 1, %s13
      %p126 = scmp.lt.s32.totalorder %s13, 3
      %p127 = pnand %p125, %p126
      %p128 = pneg %p127
      // Predicated region
      $region9: #{tpu_custom_call.1} parent=5 // pred_check
        _
      $region10: #{tpu_custom_call.1} parent=5 // pred_check_branch
        %130 = sbr.rel (%p127) target = $region12
      $region11: #{tpu_custom_call.1} parent=5 // pred_region
        %s131 = ssub.s32 %s13, 1
      $region12: #{tpu_custom_call.1} parent=5 // pred_fallthru
        _
      %p132 = scmp.lt.s32.totalorder %s13, 2
      // Predicated region
      $region13: #{tpu_custom_call.1} parent=5 // pred_check
        %p133 = pneg %p132
      $region14: #{tpu_custom_call.1} parent=5 // pred_check_branch
        %135 = sbr.rel (%p133) target = $region16
      $region15: #{tpu_custom_call.1} parent=5 // pred_region
        // Predicated region
        $region17: #{tpu_custom_call.1} parent=15 // pred_check
          %p136 = pneg %p33
        $region18: #{tpu_custom_call.1} parent=15 // pred_check_branch
          %138 = sbr.rel (%p136) target = $region20
        $region19: #{tpu_custom_call.1} parent=15 // pred_region
          %p139 = scmp.lt.s32.totalorder %s13, 1
          %s140 = scalar_select %p139, %s13, 1
          %s141 = smul.addr %s140, 2
          %s142 = smul.addr %s141, 4
          %s143 = scalar_lea.vmem %s0, %s142
        $region20: #{tpu_custom_call.1} parent=15 // pred_fallthru
          _
        // Predicated region
        $region21: #{tpu_custom_call.1} parent=15 // pred_check
          %p144 = pneg %p59
        $region22: #{tpu_custom_call.1} parent=15 // pred_check_branch
          %146 = sbr.rel (%p144) target = $region24
        $region23: #{tpu_custom_call.1} parent=15 // pred_region
          %p147 = scmp.lt.s32.totalorder %s13, 1
          %s148 = scalar_select %p147, %s13, 1
          %s149 = smul.addr %s148, 2
          %s150 = smul.addr %s149, 4
          %s151 = scalar_lea.vmem %s1, %s150
        $region24: #{tpu_custom_call.1} parent=15 // pred_fallthru
          _
      $region16: #{tpu_custom_call.1} parent=5 // pred_fallthru
        _
      %p152 = scmp.le.s32.totalorder 1, %s13
      %p153 = scmp.lt.s32.totalorder %s13, 3
      %p154 = pnand %p152, %p153
      %p155 = pneg %p154
      // Predicated region
      $region25: #{tpu_custom_call.1} parent=5 // pred_check
        _
      $region26: #{tpu_custom_call.1} parent=5 // pred_check_branch
        %157 = sbr.rel (%p154) target = $region28
      $region27: #{tpu_custom_call.1} parent=5 // pred_region
        %s158 = ssub.s32 %s13, 1
        %p159 = scmp.lt.s32.totalorder %s18, 1
        %s160 = scalar_select %p159, %s18, 1
        %s161 = smul.addr %s160, 2
        %s162 = smul.addr %s161, 4
        %s163 = scalar_lea.vmem %s0, %s162
        %p164 = pneg %p39
        %p165 = pneg %p36
        %p166 = scmp.lt.s32.totalorder %s18, 1
        %s167 = scalar_select %p166, %s18, 1
        %s168 = smul.addr %s167, 2
        %s169 = smul.addr %s168, 4
        %s170 = scalar_lea.vmem %s1, %s169
        %p171 = pneg %p65
        %p172 = pneg %p62
        %p173 = pneg %p91
        %p174 = pneg %p88
        %p175 = scmp.lt.s32.totalorder %s18, 1
        %s176 = scalar_select %p175, %s18, 1
        %s177 = smul.addr %s176, 2
        %s178 = smul.addr %s177, 4
        %s179 = scalar_lea.vmem %s2, %s178
        %p180 = pneg %p117
        %p181 = pneg %p114
        %s182 = sand.u32 %s104, 1
        %s183 = scalar_lea.sflag [#allocation3], %s182
        %s184 = sand.u32 %s104, 1
        %s185 = scalar_lea.vmem [#allocation2], %s184
        %p186 = scmp.lt.s32.totalorder %s18, 1
        %s187 = scalar_select %p186, %s18, 1
        %s188 = smul.addr %s187, 2
        %s189 = smul.addr %s188, 4
        %s190 = scalar_lea.vmem %s0, %s189
        %p191 = scmp.lt.s32.totalorder %s18, 1
        %s192 = scalar_select %p191, %s18, 1
        %s193 = smul.addr %s192, 2
        %s194 = smul.addr %s193, 4
        %s195 = scalar_lea.vmem %s1, %s194
        %p196 = scmp.lt.s32.totalorder %s18, 1
        %s197 = scalar_select %p196, %s18, 1
        %s198 = smul.addr %s197, 2
        %s199 = smul.addr %s198, 4
        %s200 = scalar_lea.vmem %s2, %s199
        %v201 = vld [vmem:[%s190] sm:$0x77]
        %v203 = vcombine.high %v201, %v201
        %vm205 = vcmask 1042432
        %v206 = vsel %vm205, %v201, 0.0
        %v207 = vrot.slane %v206, 4
        %v208 = vadd.f32 %v206, %v207
        %v209 = vrot.slane %v208, 2
        %v210 = vadd.f32 %v208, %v209
        %v211 = vrot.slane %v210, 1
        %v212 = vadd.f32 %v210, %v211
        %v213 = vsel %vm205, %v203, 0.0
        %v214 = vrot.slane %v213, 4
        %v215 = vadd.f32 %v213, %v214
        %v216 = vrot.slane %v215, 2
        %v217 = vadd.f32 %v215, %v216
        %v218 = vrot.slane %v217, 1
        %v219 = vadd.f32 %v217, %v218
        %v220 = vadd.f32 %v212, 0.0001
        %v221 = vadd.f32 %v219, 0.0001
        %v222 = vrcp.pop %v220
        %v223 = vrcp.pop %v221
        %v226 = vcombine.low %v222, %v223
        %v228 = vmul.f32 %v201, %v226
        %v229 = vlaneseq
        %v230 = vshrl.u32 %v229, 7
        %v231 = vadd.s32 %v230, 8
        %v232 = vadd.s32 %v230, 16
        %v233 = vadd.s32 %v230, 24
        %v234 = vadd.s32 %v230, 32
        %v235 = vadd.s32 %v230, 40
        %v236 = vadd.s32 %v230, 48
        %v237 = vadd.s32 %v230, 56
        %v238 = vadd.s32 %v230, 64
        %v239 = vadd.s32 %v230, 72
        %v240 = vadd.s32 %v230, 80
        %v241 = vadd.s32 %v230, 88
        %v242 = vadd.s32 %v230, 96
        %v243 = vadd.s32 %v230, 104
        %v244 = vadd.s32 %v230, 112
        %v245 = vadd.s32 %v230, 120
        %v246 = vadd.s32 %v230, 128
        %v247 = vadd.s32 %v230, 136
        %v248 = vadd.s32 %v230, 144
        %v249 = vadd.s32 %v230, 152
        %v250 = vadd.s32 %v230, 160
        %v251 = vadd.s32 %v230, 168
        %v252 = vadd.s32 %v230, 176
        %v253 = vadd.s32 %v230, 184
        %v254 = vadd.s32 %v230, 192
        %v255 = vadd.s32 %v230, 200
        %v256 = vadd.s32 %v230, 208
        %v257 = vadd.s32 %v230, 216
        %v258 = vadd.s32 %v230, 224
        %v259 = vadd.s32 %v230, 232
        %v260 = vadd.s32 %v230, 240
        %v261 = vadd.s32 %v230, 248
        %v262 = vlaneseq
        %v263 = vand.u32 %v262, 127
        %v264 = vadd.s32 %v263, 128
        %v265 = vshra.s32 %v230, 4
        %v266 = vshra.s32 %v231, 4
        %v267 = vshra.s32 %v232, 4
        %v268 = vshra.s32 %v233, 4
        %v269 = vshra.s32 %v234, 4
        %v270 = vshra.s32 %v235, 4
        %v271 = vshra.s32 %v236, 4
        %v272 = vshra.s32 %v237, 4
        %v273 = vshra.s32 %v238, 4
        %v274 = vshra.s32 %v239, 4
        %v275 = vshra.s32 %v240, 4
        %v276 = vshra.s32 %v241, 4
        %v277 = vshra.s32 %v242, 4
        %v278 = vshra.s32 %v243, 4
        %v279 = vshra.s32 %v244, 4
        %v280 = vshra.s32 %v245, 4
        %v281 = vshra.s32 %v246, 4
        %v282 = vshra.s32 %v247, 4
        %v283 = vshra.s32 %v248, 4
        %v284 = vshra.s32 %v249, 4
        %v285 = vshra.s32 %v250, 4
        %v286 = vshra.s32 %v251, 4
        %v287 = vshra.s32 %v252, 4
        %v288 = vshra.s32 %v253, 4
        %v289 = vshra.s32 %v254, 4
        %v290 = vshra.s32 %v255, 4
        %v291 = vshra.s32 %v256, 4
        %v292 = vshra.s32 %v257, 4
        %v293 = vshra.s32 %v258, 4
        %v294 = vshra.s32 %v259, 4
        %v295 = vshra.s32 %v260, 4
        %v296 = vshra.s32 %v261, 4
        %v297 = vand.u32 %v230, 15
        %v298 = vand.u32 %v231, 15
        %v299 = vand.u32 %v232, 15
        %v300 = vand.u32 %v233, 15
        %v301 = vand.u32 %v234, 15
        %v302 = vand.u32 %v235, 15
        %v303 = vand.u32 %v236, 15
        %v304 = vand.u32 %v237, 15
        %v305 = vand.u32 %v238, 15
        %v306 = vand.u32 %v239, 15
        %v307 = vand.u32 %v240, 15
        %v308 = vand.u32 %v241, 15
        %v309 = vand.u32 %v242, 15
        %v310 = vand.u32 %v243, 15
        %v311 = vand.u32 %v244, 15
        %v312 = vand.u32 %v245, 15
        %v313 = vand.u32 %v246, 15
        %v314 = vand.u32 %v247, 15
        %v315 = vand.u32 %v248, 15
        %v316 = vand.u32 %v249, 15
        %v317 = vand.u32 %v250, 15
        %v318 = vand.u32 %v251, 15
        %v319 = vand.u32 %v252, 15
        %v320 = vand.u32 %v253, 15
        %v321 = vand.u32 %v254, 15
        %v322 = vand.u32 %v255, 15
        %v323 = vand.u32 %v256, 15
        %v324 = vand.u32 %v257, 15
        %v325 = vand.u32 %v258, 15
        %v326 = vand.u32 %v259, 15
        %v327 = vand.u32 %v260, 15
        %v328 = vand.u32 %v261, 15
        %v329 = vshra.s32 %v263, 4
        %v330 = vshra.s32 %v264, 4
        %v331 = vand.u32 %v263, 15
        %v332 = vand.u32 %v264, 15
        %v333 = vsub.s32 %v265, %v329
        %v334 = vsub.s32 %v265, %v330
        %v335 = vsub.s32 %v266, %v329
        %v336 = vsub.s32 %v266, %v330
        %v337 = vsub.s32 %v267, %v329
        %v338 = vsub.s32 %v267, %v330
        %v339 = vsub.s32 %v268, %v329
        %v340 = vsub.s32 %v268, %v330
        %v341 = vsub.s32 %v269, %v329
        %v342 = vsub.s32 %v269, %v330
        %v343 = vsub.s32 %v270, %v329
        %v344 = vsub.s32 %v270, %v330
        %v345 = vsub.s32 %v271, %v329
        %v346 = vsub.s32 %v271, %v330
        %v347 = vsub.s32 %v272, %v329
        %v348 = vsub.s32 %v272, %v330
        %v349 = vsub.s32 %v273, %v329
        %v350 = vsub.s32 %v273, %v330
        %v351 = vsub.s32 %v274, %v329
        %v352 = vsub.s32 %v274, %v330
        %v353 = vsub.s32 %v275, %v329
        %v354 = vsub.s32 %v275, %v330
        %v355 = vsub.s32 %v276, %v329
        %v356 = vsub.s32 %v276, %v330
        %v357 = vsub.s32 %v277, %v329
        %v358 = vsub.s32 %v277, %v330
        %v359 = vsub.s32 %v278, %v329
        %v360 = vsub.s32 %v278, %v330
        %v361 = vsub.s32 %v279, %v329
        %v362 = vsub.s32 %v279, %v330
        %v363 = vsub.s32 %v280, %v329
        %v364 = vsub.s32 %v280, %v330
        %v365 = vsub.s32 %v281, %v329
        %v366 = vsub.s32 %v281, %v330
        %v367 = vsub.s32 %v282, %v329
        %v368 = vsub.s32 %v282, %v330
        %v369 = vsub.s32 %v283, %v329
        %v370 = vsub.s32 %v283, %v330
        %v371 = vsub.s32 %v284, %v329
        %v372 = vsub.s32 %v284, %v330
        %v373 = vsub.s32 %v285, %v329
        %v374 = vsub.s32 %v285, %v330
        %v375 = vsub.s32 %v286, %v329
        %v376 = vsub.s32 %v286, %v330
        %v377 = vsub.s32 %v287, %v329
        %v378 = vsub.s32 %v287, %v330
        %v379 = vsub.s32 %v288, %v329
        %v380 = vsub.s32 %v288, %v330
        %v381 = vsub.s32 %v289, %v329
        %v382 = vsub.s32 %v289, %v330
        %v383 = vsub.s32 %v290, %v329
        %v384 = vsub.s32 %v290, %v330
        %v385 = vsub.s32 %v291, %v329
        %v386 = vsub.s32 %v291, %v330
        %v387 = vsub.s32 %v292, %v329
        %v388 = vsub.s32 %v292, %v330
        %v389 = vsub.s32 %v293, %v329
        %v390 = vsub.s32 %v293, %v330
        %v391 = vsub.s32 %v294, %v329
        %v392 = vsub.s32 %v294, %v330
        %v393 = vsub.s32 %v295, %v329
        %v394 = vsub.s32 %v295, %v330
        %v395 = vsub.s32 %v296, %v329
        %v396 = vsub.s32 %v296, %v330
        %vm397 = vcmp.lt.s32.totalorder %v333, 0
        %v398 = vsub.s32 0, %v333
        %v399 = vsel %vm397, %v398, %v333
        %vm400 = vcmp.lt.s32.totalorder %v334, 0
        %v401 = vsub.s32 0, %v334
        %v402 = vsel %vm400, %v401, %v334
        %vm403 = vcmp.lt.s32.totalorder %v335, 0
        %v404 = vsub.s32 0, %v335
        %v405 = vsel %vm403, %v404, %v335
        %vm406 = vcmp.lt.s32.totalorder %v336, 0
        %v407 = vsub.s32 0, %v336
        %v408 = vsel %vm406, %v407, %v336
        %vm409 = vcmp.lt.s32.totalorder %v337, 0
        %v410 = vsub.s32 0, %v337
        %v411 = vsel %vm409, %v410, %v337
        %vm412 = vcmp.lt.s32.totalorder %v338, 0
        %v413 = vsub.s32 0, %v338
        %v414 = vsel %vm412, %v413, %v338
        %vm415 = vcmp.lt.s32.totalorder %v339, 0
        %v416 = vsub.s32 0, %v339
        %v417 = vsel %vm415, %v416, %v339
        %vm418 = vcmp.lt.s32.totalorder %v340, 0
        %v419 = vsub.s32 0, %v340
        %v420 = vsel %vm418, %v419, %v340
        %vm421 = vcmp.lt.s32.totalorder %v341, 0
        %v422 = vsub.s32 0, %v341
        %v423 = vsel %vm421, %v422, %v341
        %vm424 = vcmp.lt.s32.totalorder %v342, 0
        %v425 = vsub.s32 0, %v342
        %v426 = vsel %vm424, %v425, %v342
        %vm427 = vcmp.lt.s32.totalorder %v343, 0
        %v428 = vsub.s32 0, %v343
        %v429 = vsel %vm427, %v428, %v343
        %vm430 = vcmp.lt.s32.totalorder %v344, 0
        %v431 = vsub.s32 0, %v344
        %v432 = vsel %vm430, %v431, %v344
        %vm433 = vcmp.lt.s32.totalorder %v345, 0
        %v434 = vsub.s32 0, %v345
        %v435 = vsel %vm433, %v434, %v345
        %vm436 = vcmp.lt.s32.totalorder %v346, 0
        %v437 = vsub.s32 0, %v346
        %v438 = vsel %vm436, %v437, %v346
        %vm439 = vcmp.lt.s32.totalorder %v347, 0
        %v440 = vsub.s32 0, %v347
        %v441 = vsel %vm439, %v440, %v347
        %vm442 = vcmp.lt.s32.totalorder %v348, 0
        %v443 = vsub.s32 0, %v348
        %v444 = vsel %vm442, %v443, %v348
        %vm445 = vcmp.lt.s32.totalorder %v349, 0
        %v446 = vsub.s32 0, %v349
        %v447 = vsel %vm445, %v446, %v349
        %vm448 = vcmp.lt.s32.totalorder %v350, 0
        %v449 = vsub.s32 0, %v350
        %v450 = vsel %vm448, %v449, %v350
        %vm451 = vcmp.lt.s32.totalorder %v351, 0
        %v452 = vsub.s32 0, %v351
        %v453 = vsel %vm451, %v452, %v351
        %vm454 = vcmp.lt.s32.totalorder %v352, 0
        %v455 = vsub.s32 0, %v352
        %v456 = vsel %vm454, %v455, %v352
        %vm457 = vcmp.lt.s32.totalorder %v353, 0
        %v458 = vsub.s32 0, %v353
        %v459 = vsel %vm457, %v458, %v353
        %vm460 = vcmp.lt.s32.totalorder %v354, 0
        %v461 = vsub.s32 0, %v354
        %v462 = vsel %vm460, %v461, %v354
        %vm463 = vcmp.lt.s32.totalorder %v355, 0
        %v464 = vsub.s32 0, %v355
        %v465 = vsel %vm463, %v464, %v355
        %vm466 = vcmp.lt.s32.totalorder %v356, 0
        %v467 = vsub.s32 0, %v356
        %v468 = vsel %vm466, %v467, %v356
        %vm469 = vcmp.lt.s32.totalorder %v357, 0
        %v470 = vsub.s32 0, %v357
        %v471 = vsel %vm469, %v470, %v357
        %vm472 = vcmp.lt.s32.totalorder %v358, 0
        %v473 = vsub.s32 0, %v358
        %v474 = vsel %vm472, %v473, %v358
        %vm475 = vcmp.lt.s32.totalorder %v359, 0
        %v476 = vsub.s32 0, %v359
        %v477 = vsel %vm475, %v476, %v359
        %vm478 = vcmp.lt.s32.totalorder %v360, 0
        %v479 = vsub.s32 0, %v360
        %v480 = vsel %vm478, %v479, %v360
        %vm481 = vcmp.lt.s32.totalorder %v361, 0
        %v482 = vsub.s32 0, %v361
        %v483 = vsel %vm481, %v482, %v361
        %vm484 = vcmp.lt.s32.totalorder %v362, 0
        %v485 = vsub.s32 0, %v362
        %v486 = vsel %vm484, %v485, %v362
        %vm487 = vcmp.lt.s32.totalorder %v363, 0
        %v488 = vsub.s32 0, %v363
        %v489 = vsel %vm487, %v488, %v363
        %vm490 = vcmp.lt.s32.totalorder %v364, 0
        %v491 = vsub.s32 0, %v364
        %v492 = vsel %vm490, %v491, %v364
        %vm493 = vcmp.lt.s32.totalorder %v365, 0
        %v494 = vsub.s32 0, %v365
        %v495 = vsel %vm493, %v494, %v365
        %vm496 = vcmp.lt.s32.totalorder %v366, 0
        %v497 = vsub.s32 0, %v366
        %v498 = vsel %vm496, %v497, %v366
        %vm499 = vcmp.lt.s32.totalorder %v367, 0
        %v500 = vsub.s32 0, %v367
        %v501 = vsel %vm499, %v500, %v367
        %vm502 = vcmp.lt.s32.totalorder %v368, 0
        %v503 = vsub.s32 0, %v368
        %v504 = vsel %vm502, %v503, %v368
        %vm505 = vcmp.lt.s32.totalorder %v369, 0
        %v506 = vsub.s32 0, %v369
        %v507 = vsel %vm505, %v506, %v369
        %vm508 = vcmp.lt.s32.totalorder %v370, 0
        %v509 = vsub.s32 0, %v370
        %v510 = vsel %vm508, %v509, %v370
        %vm511 = vcmp.lt.s32.totalorder %v371, 0
        %v512 = vsub.s32 0, %v371
        %v513 = vsel %vm511, %v512, %v371
        %vm514 = vcmp.lt.s32.totalorder %v372, 0
        %v515 = vsub.s32 0, %v372
        %v516 = vsel %vm514, %v515, %v372
        %vm517 = vcmp.lt.s32.totalorder %v373, 0
        %v518 = vsub.s32 0, %v373
        %v519 = vsel %vm517, %v518, %v373
        %vm520 = vcmp.lt.s32.totalorder %v374, 0
        %v521 = vsub.s32 0, %v374
        %v522 = vsel %vm520, %v521, %v374
        %vm523 = vcmp.lt.s32.totalorder %v375, 0
        %v524 = vsub.s32 0, %v375
        %v525 = vsel %vm523, %v524, %v375
        %vm526 = vcmp.lt.s32.totalorder %v376, 0
        %v527 = vsub.s32 0, %v376
        %v528 = vsel %vm526, %v527, %v376
        %vm529 = vcmp.lt.s32.totalorder %v377, 0
        %v530 = vsub.s32 0, %v377
        %v531 = vsel %vm529, %v530, %v377
        %vm532 = vcmp.lt.s32.totalorder %v378, 0
        %v533 = vsub.s32 0, %v378
        %v534 = vsel %vm532, %v533, %v378
        %vm535 = vcmp.lt.s32.totalorder %v379, 0
        %v536 = vsub.s32 0, %v379
        %v537 = vsel %vm535, %v536, %v379
        %vm538 = vcmp.lt.s32.totalorder %v380, 0
        %v539 = vsub.s32 0, %v380
        %v540 = vsel %vm538, %v539, %v380
        %vm541 = vcmp.lt.s32.totalorder %v381, 0
        %v542 = vsub.s32 0, %v381
        %v543 = vsel %vm541, %v542, %v381
        %vm544 = vcmp.lt.s32.totalorder %v382, 0
        %v545 = vsub.s32 0, %v382
        %v546 = vsel %vm544, %v545, %v382
        %vm547 = vcmp.lt.s32.totalorder %v383, 0
        %v548 = vsub.s32 0, %v383
        %v549 = vsel %vm547, %v548, %v383
        %vm550 = vcmp.lt.s32.totalorder %v384, 0
        %v551 = vsub.s32 0, %v384
        %v552 = vsel %vm550, %v551, %v384
        %vm553 = vcmp.lt.s32.totalorder %v385, 0
        %v554 = vsub.s32 0, %v385
        %v555 = vsel %vm553, %v554, %v385
        %vm556 = vcmp.lt.s32.totalorder %v386, 0
        %v557 = vsub.s32 0, %v386
        %v558 = vsel %vm556, %v557, %v386
        %vm559 = vcmp.lt.s32.totalorder %v387, 0
        %v560 = vsub.s32 0, %v387
        %v561 = vsel %vm559, %v560, %v387
        %vm562 = vcmp.lt.s32.totalorder %v388, 0
        %v563 = vsub.s32 0, %v388
        %v564 = vsel %vm562, %v563, %v388
        %vm565 = vcmp.lt.s32.totalorder %v389, 0
        %v566 = vsub.s32 0, %v389
        %v567 = vsel %vm565, %v566, %v389
        %vm568 = vcmp.lt.s32.totalorder %v390, 0
        %v569 = vsub.s32 0, %v390
        %v570 = vsel %vm568, %v569, %v390
        %vm571 = vcmp.lt.s32.totalorder %v391, 0
        %v572 = vsub.s32 0, %v391
        %v573 = vsel %vm571, %v572, %v391
        %vm574 = vcmp.lt.s32.totalorder %v392, 0
        %v575 = vsub.s32 0, %v392
        %v576 = vsel %vm574, %v575, %v392
        %vm577 = vcmp.lt.s32.totalorder %v393, 0
        %v578 = vsub.s32 0, %v393
        %v579 = vsel %vm577, %v578, %v393
        %vm580 = vcmp.lt.s32.totalorder %v394, 0
        %v581 = vsub.s32 0, %v394
        %v582 = vsel %vm580, %v581, %v394
        %vm583 = vcmp.lt.s32.totalorder %v395, 0
        %v584 = vsub.s32 0, %v395
        %v585 = vsel %vm583, %v584, %v395
        %vm586 = vcmp.lt.s32.totalorder %v396, 0
        %v587 = vsub.s32 0, %v396
        %v588 = vsel %vm586, %v587, %v396
        %vm589 = vcmp.le.s32.totalorder %v399, 3
        %vm590 = vcmp.le.s32.totalorder %v402, 3
        %vm591 = vcmp.le.s32.totalorder %v405, 3
        %vm592 = vcmp.le.s32.totalorder %v408, 3
        %vm593 = vcmp.le.s32.totalorder %v411, 3
        %vm594 = vcmp.le.s32.totalorder %v414, 3
        %vm595 = vcmp.le.s32.totalorder %v417, 3
        %vm596 = vcmp.le.s32.totalorder %v420, 3
        %vm597 = vcmp.le.s32.totalorder %v423, 3
        %vm598 = vcmp.le.s32.totalorder %v426, 3
        %vm599 = vcmp.le.s32.totalorder %v429, 3
        %vm600 = vcmp.le.s32.totalorder %v432, 3
        %vm601 = vcmp.le.s32.totalorder %v435, 3
        %vm602 = vcmp.le.s32.totalorder %v438, 3
        %vm603 = vcmp.le.s32.totalorder %v441, 3
        %vm604 = vcmp.le.s32.totalorder %v444, 3
        %vm605 = vcmp.le.s32.totalorder %v447, 3
        %vm606 = vcmp.le.s32.totalorder %v450, 3
        %vm607 = vcmp.le.s32.totalorder %v453, 3
        %vm608 = vcmp.le.s32.totalorder %v456, 3
        %vm609 = vcmp.le.s32.totalorder %v459, 3
        %vm610 = vcmp.le.s32.totalorder %v462, 3
        %vm611 = vcmp.le.s32.totalorder %v465, 3
        %vm612 = vcmp.le.s32.totalorder %v468, 3
        %vm613 = vcmp.le.s32.totalorder %v471, 3
        %vm614 = vcmp.le.s32.totalorder %v474, 3
        %vm615 = vcmp.le.s32.totalorder %v477, 3
        %vm616 = vcmp.le.s32.totalorder %v480, 3
        %vm617 = vcmp.le.s32.totalorder %v483, 3
        %vm618 = vcmp.le.s32.totalorder %v486, 3
        %vm619 = vcmp.le.s32.totalorder %v489, 3
        %vm620 = vcmp.le.s32.totalorder %v492, 3
        %vm621 = vcmp.le.s32.totalorder %v495, 3
        %vm622 = vcmp.le.s32.totalorder %v498, 3
        %vm623 = vcmp.le.s32.totalorder %v501, 3
        %vm624 = vcmp.le.s32.totalorder %v504, 3
        %vm625 = vcmp.le.s32.totalorder %v507, 3
        %vm626 = vcmp.le.s32.totalorder %v510, 3
        %vm627 = vcmp.le.s32.totalorder %v513, 3
        %vm628 = vcmp.le.s32.totalorder %v516, 3
        %vm629 = vcmp.le.s32.totalorder %v519, 3
        %vm630 = vcmp.le.s32.totalorder %v522, 3
        %vm631 = vcmp.le.s32.totalorder %v525, 3
        %vm632 = vcmp.le.s32.totalorder %v528, 3
        %vm633 = vcmp.le.s32.totalorder %v531, 3
        %vm634 = vcmp.le.s32.totalorder %v534, 3
        %vm635 = vcmp.le.s32.totalorder %v537, 3
        %vm636 = vcmp.le.s32.totalorder %v540, 3
        %vm637 = vcmp.le.s32.totalorder %v543, 3
        %vm638 = vcmp.le.s32.totalorder %v546, 3
        %vm639 = vcmp.le.s32.totalorder %v549, 3
        %vm640 = vcmp.le.s32.totalorder %v552, 3
        %vm641 = vcmp.le.s32.totalorder %v555, 3
        %vm642 = vcmp.le.s32.totalorder %v558, 3
        %vm643 = vcmp.le.s32.totalorder %v561, 3
        %vm644 = vcmp.le.s32.totalorder %v564, 3
        %vm645 = vcmp.le.s32.totalorder %v567, 3
        %vm646 = vcmp.le.s32.totalorder %v570, 3
        %vm647 = vcmp.le.s32.totalorder %v573, 3
        %vm648 = vcmp.le.s32.totalorder %v576, 3
        %vm649 = vcmp.le.s32.totalorder %v579, 3
        %vm650 = vcmp.le.s32.totalorder %v582, 3
        %vm651 = vcmp.le.s32.totalorder %v585, 3
        %vm652 = vcmp.le.s32.totalorder %v588, 3
        %v653 = vsub.s32 %v297, %v331
        %v654 = vsub.s32 %v297, %v332
        %v655 = vsub.s32 %v298, %v331
        %v656 = vsub.s32 %v298, %v332
        %v657 = vsub.s32 %v299, %v331
        %v658 = vsub.s32 %v299, %v332
        %v659 = vsub.s32 %v300, %v331
        %v660 = vsub.s32 %v300, %v332
        %v661 = vsub.s32 %v301, %v331
        %v662 = vsub.s32 %v301, %v332
        %v663 = vsub.s32 %v302, %v331
        %v664 = vsub.s32 %v302, %v332
        %v665 = vsub.s32 %v303, %v331
        %v666 = vsub.s32 %v303, %v332
        %v667 = vsub.s32 %v304, %v331
        %v668 = vsub.s32 %v304, %v332
        %v669 = vsub.s32 %v305, %v331
        %v670 = vsub.s32 %v305, %v332
        %v671 = vsub.s32 %v306, %v331
        %v672 = vsub.s32 %v306, %v332
        %v673 = vsub.s32 %v307, %v331
        %v674 = vsub.s32 %v307, %v332
        %v675 = vsub.s32 %v308, %v331
        %v676 = vsub.s32 %v308, %v332
        %v677 = vsub.s32 %v309, %v331
        %v678 = vsub.s32 %v309, %v332
        %v679 = vsub.s32 %v310, %v331
        %v680 = vsub.s32 %v310, %v332
        %v681 = vsub.s32 %v311, %v331
        %v682 = vsub.s32 %v311, %v332
        %v683 = vsub.s32 %v312, %v331
        %v684 = vsub.s32 %v312, %v332
        %v685 = vsub.s32 %v313, %v331
        %v686 = vsub.s32 %v313, %v332
        %v687 = vsub.s32 %v314, %v331
        %v688 = vsub.s32 %v314, %v332
        %v689 = vsub.s32 %v315, %v331
        %v690 = vsub.s32 %v315, %v332
        %v691 = vsub.s32 %v316, %v331
        %v692 = vsub.s32 %v316, %v332
        %v693 = vsub.s32 %v317, %v331
        %v694 = vsub.s32 %v317, %v332
        %v695 = vsub.s32 %v318, %v331
        %v696 = vsub.s32 %v318, %v332
        %v697 = vsub.s32 %v319, %v331
        %v698 = vsub.s32 %v319, %v332
        %v699 = vsub.s32 %v320, %v331
        %v700 = vsub.s32 %v320, %v332
        %v701 = vsub.s32 %v321, %v331
        %v702 = vsub.s32 %v321, %v332
        %v703 = vsub.s32 %v322, %v331
        %v704 = vsub.s32 %v322, %v332
        %v705 = vsub.s32 %v323, %v331
        %v706 = vsub.s32 %v323, %v332
        %v707 = vsub.s32 %v324, %v331
        %v708 = vsub.s32 %v324, %v332
        %v709 = vsub.s32 %v325, %v331
        %v710 = vsub.s32 %v325, %v332
        %v711 = vsub.s32 %v326, %v331
        %v712 = vsub.s32 %v326, %v332
        %v713 = vsub.s32 %v327, %v331
        %v714 = vsub.s32 %v327, %v332
        %v715 = vsub.s32 %v328, %v331
        %v716 = vsub.s32 %v328, %v332
        %vm717 = vcmp.lt.s32.totalorder %v653, 0
        %v718 = vsub.s32 0, %v653
        %v719 = vsel %vm717, %v718, %v653
        %vm720 = vcmp.lt.s32.totalorder %v654, 0
        %v721 = vsub.s32 0, %v654
        %v722 = vsel %vm720, %v721, %v654
        %vm723 = vcmp.lt.s32.totalorder %v655, 0
        %v724 = vsub.s32 0, %v655
        %v725 = vsel %vm723, %v724, %v655
        %vm726 = vcmp.lt.s32.totalorder %v656, 0
        %v727 = vsub.s32 0, %v656
        %v728 = vsel %vm726, %v727, %v656
        %vm729 = vcmp.lt.s32.totalorder %v657, 0
        %v730 = vsub.s32 0, %v657
        %v731 = vsel %vm729, %v730, %v657
        %vm732 = vcmp.lt.s32.totalorder %v658, 0
        %v733 = vsub.s32 0, %v658
        %v734 = vsel %vm732, %v733, %v658
        %vm735 = vcmp.lt.s32.totalorder %v659, 0
        %v736 = vsub.s32 0, %v659
        %v737 = vsel %vm735, %v736, %v659
        %vm738 = vcmp.lt.s32.totalorder %v660, 0
        %v739 = vsub.s32 0, %v660
        %v740 = vsel %vm738, %v739, %v660
        %vm741 = vcmp.lt.s32.totalorder %v661, 0
        %v742 = vsub.s32 0, %v661
        %v743 = vsel %vm741, %v742, %v661
        %vm744 = vcmp.lt.s32.totalorder %v662, 0
        %v745 = vsub.s32 0, %v662
        %v746 = vsel %vm744, %v745, %v662
        %vm747 = vcmp.lt.s32.totalorder %v663, 0
        %v748 = vsub.s32 0, %v663
        %v749 = vsel %vm747, %v748, %v663
        %vm750 = vcmp.lt.s32.totalorder %v664, 0
        %v751 = vsub.s32 0, %v664
        %v752 = vsel %vm750, %v751, %v664
        %vm753 = vcmp.lt.s32.totalorder %v665, 0
        %v754 = vsub.s32 0, %v665
        %v755 = vsel %vm753, %v754, %v665
        %vm756 = vcmp.lt.s32.totalorder %v666, 0
        %v757 = vsub.s32 0, %v666
        %v758 = vsel %vm756, %v757, %v666
        %vm759 = vcmp.lt.s32.totalorder %v667, 0
        %v760 = vsub.s32 0, %v667
        %v761 = vsel %vm759, %v760, %v667
        %vm762 = vcmp.lt.s32.totalorder %v668, 0
        %v763 = vsub.s32 0, %v668
        %v764 = vsel %vm762, %v763, %v668
        %vm765 = vcmp.lt.s32.totalorder %v669, 0
        %v766 = vsub.s32 0, %v669
        %v767 = vsel %vm765, %v766, %v669
        %vm768 = vcmp.lt.s32.totalorder %v670, 0
        %v769 = vsub.s32 0, %v670
        %v770 = vsel %vm768, %v769, %v670
        %vm771 = vcmp.lt.s32.totalorder %v671, 0
        %v772 = vsub.s32 0, %v671
        %v773 = vsel %vm771, %v772, %v671
        %vm774 = vcmp.lt.s32.totalorder %v672, 0
        %v775 = vsub.s32 0, %v672
        %v776 = vsel %vm774, %v775, %v672
        %vm777 = vcmp.lt.s32.totalorder %v673, 0
        %v778 = vsub.s32 0, %v673
        %v779 = vsel %vm777, %v778, %v673
        %vm780 = vcmp.lt.s32.totalorder %v674, 0
        %v781 = vsub.s32 0, %v674
        %v782 = vsel %vm780, %v781, %v674
        %vm783 = vcmp.lt.s32.totalorder %v675, 0
        %v784 = vsub.s32 0, %v675
        %v785 = vsel %vm783, %v784, %v675
        %vm786 = vcmp.lt.s32.totalorder %v676, 0
        %v787 = vsub.s32 0, %v676
        %v788 = vsel %vm786, %v787, %v676
        %vm789 = vcmp.lt.s32.totalorder %v677, 0
        %v790 = vsub.s32 0, %v677
        %v791 = vsel %vm789, %v790, %v677
        %vm792 = vcmp.lt.s32.totalorder %v678, 0
        %v793 = vsub.s32 0, %v678
        %v794 = vsel %vm792, %v793, %v678
        %vm795 = vcmp.lt.s32.totalorder %v679, 0
        %v796 = vsub.s32 0, %v679
        %v797 = vsel %vm795, %v796, %v679
        %vm798 = vcmp.lt.s32.totalorder %v680, 0
        %v799 = vsub.s32 0, %v680
        %v800 = vsel %vm798, %v799, %v680
        %vm801 = vcmp.lt.s32.totalorder %v681, 0
        %v802 = vsub.s32 0, %v681
        %v803 = vsel %vm801, %v802, %v681
        %vm804 = vcmp.lt.s32.totalorder %v682, 0
        %v805 = vsub.s32 0, %v682
        %v806 = vsel %vm804, %v805, %v682
        %vm807 = vcmp.lt.s32.totalorder %v683, 0
        %v808 = vsub.s32 0, %v683
        %v809 = vsel %vm807, %v808, %v683
        %vm810 = vcmp.lt.s32.totalorder %v684, 0
        %v811 = vsub.s32 0, %v684
        %v812 = vsel %vm810, %v811, %v684
        %vm813 = vcmp.lt.s32.totalorder %v685, 0
        %v814 = vsub.s32 0, %v685
        %v815 = vsel %vm813, %v814, %v685
        %vm816 = vcmp.lt.s32.totalorder %v686, 0
        %v817 = vsub.s32 0, %v686
        %v818 = vsel %vm816, %v817, %v686
        %vm819 = vcmp.lt.s32.totalorder %v687, 0
        %v820 = vsub.s32 0, %v687
        %v821 = vsel %vm819, %v820, %v687
        %vm822 = vcmp.lt.s32.totalorder %v688, 0
        %v823 = vsub.s32 0, %v688
        %v824 = vsel %vm822, %v823, %v688
        %vm825 = vcmp.lt.s32.totalorder %v689, 0
        %v826 = vsub.s32 0, %v689
        %v827 = vsel %vm825, %v826, %v689
        %vm828 = vcmp.lt.s32.totalorder %v690, 0
        %v829 = vsub.s32 0, %v690
        %v830 = vsel %vm828, %v829, %v690
        %vm831 = vcmp.lt.s32.totalorder %v691, 0
        %v832 = vsub.s32 0, %v691
        %v833 = vsel %vm831, %v832, %v691
        %vm834 = vcmp.lt.s32.totalorder %v692, 0
        %v835 = vsub.s32 0, %v692
        %v836 = vsel %vm834, %v835, %v692
        %vm837 = vcmp.lt.s32.totalorder %v693, 0
        %v838 = vsub.s32 0, %v693
        %v839 = vsel %vm837, %v838, %v693
        %vm840 = vcmp.lt.s32.totalorder %v694, 0
        %v841 = vsub.s32 0, %v694
        %v842 = vsel %vm840, %v841, %v694
        %vm843 = vcmp.lt.s32.totalorder %v695, 0
        %v844 = vsub.s32 0, %v695
        %v845 = vsel %vm843, %v844, %v695
        %vm846 = vcmp.lt.s32.totalorder %v696, 0
        %v847 = vsub.s32 0, %v696
        %v848 = vsel %vm846, %v847, %v696
        %vm849 = vcmp.lt.s32.totalorder %v697, 0
        %v850 = vsub.s32 0, %v697
        %v851 = vsel %vm849, %v850, %v697
        %vm852 = vcmp.lt.s32.totalorder %v698, 0
        %v853 = vsub.s32 0, %v698
        %v854 = vsel %vm852, %v853, %v698
        %vm855 = vcmp.lt.s32.totalorder %v699, 0
        %v856 = vsub.s32 0, %v699
        %v857 = vsel %vm855, %v856, %v699
        %vm858 = vcmp.lt.s32.totalorder %v700, 0
        %v859 = vsub.s32 0, %v700
        %v860 = vsel %vm858, %v859, %v700
        %vm861 = vcmp.lt.s32.totalorder %v701, 0
        %v862 = vsub.s32 0, %v701
        %v863 = vsel %vm861, %v862, %v701
        %vm864 = vcmp.lt.s32.totalorder %v702, 0
        %v865 = vsub.s32 0, %v702
        %v866 = vsel %vm864, %v865, %v702
        %vm867 = vcmp.lt.s32.totalorder %v703, 0
        %v868 = vsub.s32 0, %v703
        %v869 = vsel %vm867, %v868, %v703
        %vm870 = vcmp.lt.s32.totalorder %v704, 0
        %v871 = vsub.s32 0, %v704
        %v872 = vsel %vm870, %v871, %v704
        %vm873 = vcmp.lt.s32.totalorder %v705, 0
        %v874 = vsub.s32 0, %v705
        %v875 = vsel %vm873, %v874, %v705
        %vm876 = vcmp.lt.s32.totalorder %v706, 0
        %v877 = vsub.s32 0, %v706
        %v878 = vsel %vm876, %v877, %v706
        %vm879 = vcmp.lt.s32.totalorder %v707, 0
        %v880 = vsub.s32 0, %v707
        %v881 = vsel %vm879, %v880, %v707
        %vm882 = vcmp.lt.s32.totalorder %v708, 0
        %v883 = vsub.s32 0, %v708
        %v884 = vsel %vm882, %v883, %v708
        %vm885 = vcmp.lt.s32.totalorder %v709, 0
        %v886 = vsub.s32 0, %v709
        %v887 = vsel %vm885, %v886, %v709
        %vm888 = vcmp.lt.s32.totalorder %v710, 0
        %v889 = vsub.s32 0, %v710
        %v890 = vsel %vm888, %v889, %v710
        %vm891 = vcmp.lt.s32.totalorder %v711, 0
        %v892 = vsub.s32 0, %v711
        %v893 = vsel %vm891, %v892, %v711
        %vm894 = vcmp.lt.s32.totalorder %v712, 0
        %v895 = vsub.s32 0, %v712
        %v896 = vsel %vm894, %v895, %v712
        %vm897 = vcmp.lt.s32.totalorder %v713, 0
        %v898 = vsub.s32 0, %v713
        %v899 = vsel %vm897, %v898, %v713
        %vm900 = vcmp.lt.s32.totalorder %v714, 0
        %v901 = vsub.s32 0, %v714
        %v902 = vsel %vm900, %v901, %v714
        %vm903 = vcmp.lt.s32.totalorder %v715, 0
        %v904 = vsub.s32 0, %v715
        %v905 = vsel %vm903, %v904, %v715
        %vm906 = vcmp.lt.s32.totalorder %v716, 0
        %v907 = vsub.s32 0, %v716
        %v908 = vsel %vm906, %v907, %v716
        %vm909 = vcmp.le.s32.totalorder %v719, 3
        %vm910 = vcmp.le.s32.totalorder %v722, 3
        %vm911 = vcmp.le.s32.totalorder %v725, 3
        %vm912 = vcmp.le.s32.totalorder %v728, 3
        %vm913 = vcmp.le.s32.totalorder %v731, 3
        %vm914 = vcmp.le.s32.totalorder %v734, 3
        %vm915 = vcmp.le.s32.totalorder %v737, 3
        %vm916 = vcmp.le.s32.totalorder %v740, 3
        %vm917 = vcmp.le.s32.totalorder %v743, 3
        %vm918 = vcmp.le.s32.totalorder %v746, 3
        %vm919 = vcmp.le.s32.totalorder %v749, 3
        %vm920 = vcmp.le.s32.totalorder %v752, 3
        %vm921 = vcmp.le.s32.totalorder %v755, 3
        %vm922 = vcmp.le.s32.totalorder %v758, 3
        %vm923 = vcmp.le.s32.totalorder %v761, 3
        %vm924 = vcmp.le.s32.totalorder %v764, 3
        %vm925 = vcmp.le.s32.totalorder %v767, 3
        %vm926 = vcmp.le.s32.totalorder %v770, 3
        %vm927 = vcmp.le.s32.totalorder %v773, 3
        %vm928 = vcmp.le.s32.totalorder %v776, 3
        %vm929 = vcmp.le.s32.totalorder %v779, 3
        %vm930 = vcmp.le.s32.totalorder %v782, 3
        %vm931 = vcmp.le.s32.totalorder %v785, 3
        %vm932 = vcmp.le.s32.totalorder %v788, 3
        %vm933 = vcmp.le.s32.totalorder %v791, 3
        %vm934 = vcmp.le.s32.totalorder %v794, 3
        %vm935 = vcmp.le.s32.totalorder %v797, 3
        %vm936 = vcmp.le.s32.totalorder %v800, 3
        %vm937 = vcmp.le.s32.totalorder %v803, 3
        %vm938 = vcmp.le.s32.totalorder %v806, 3
        %vm939 = vcmp.le.s32.totalorder %v809, 3
        %vm940 = vcmp.le.s32.totalorder %v812, 3
        %vm941 = vcmp.le.s32.totalorder %v815, 3
        %vm942 = vcmp.le.s32.totalorder %v818, 3
        %vm943 = vcmp.le.s32.totalorder %v821, 3
        %vm944 = vcmp.le.s32.totalorder %v824, 3
        %vm945 = vcmp.le.s32.totalorder %v827, 3
        %vm946 = vcmp.le.s32.totalorder %v830, 3
        %vm947 = vcmp.le.s32.totalorder %v833, 3
        %vm948 = vcmp.le.s32.totalorder %v836, 3
        %vm949 = vcmp.le.s32.totalorder %v839, 3
        %vm950 = vcmp.le.s32.totalorder %v842, 3
        %vm951 = vcmp.le.s32.totalorder %v845, 3
        %vm952 = vcmp.le.s32.totalorder %v848, 3
        %vm953 = vcmp.le.s32.totalorder %v851, 3
        %vm954 = vcmp.le.s32.totalorder %v854, 3
        %vm955 = vcmp.le.s32.totalorder %v857, 3
        %vm956 = vcmp.le.s32.totalorder %v860, 3
        %vm957 = vcmp.le.s32.totalorder %v863, 3
        %vm958 = vcmp.le.s32.totalorder %v866, 3
        %vm959 = vcmp.le.s32.totalorder %v869, 3
        %vm960 = vcmp.le.s32.totalorder %v872, 3
        %vm961 = vcmp.le.s32.totalorder %v875, 3
        %vm962 = vcmp.le.s32.totalorder %v878, 3
        %vm963 = vcmp.le.s32.totalorder %v881, 3
        %vm964 = vcmp.le.s32.totalorder %v884, 3
        %vm965 = vcmp.le.s32.totalorder %v887, 3
        %vm966 = vcmp.le.s32.totalorder %v890, 3
        %vm967 = vcmp.le.s32.totalorder %v893, 3
        %vm968 = vcmp.le.s32.totalorder %v896, 3
        %vm969 = vcmp.le.s32.totalorder %v899, 3
        %vm970 = vcmp.le.s32.totalorder %v902, 3
        %vm971 = vcmp.le.s32.totalorder %v905, 3
        %vm972 = vcmp.le.s32.totalorder %v908, 3
        %vm973 = vmand %vm589, %vm909
        %vm974 = vmand %vm590, %vm910
        %vm975 = vmand %vm591, %vm911
        %vm976 = vmand %vm592, %vm912
        %vm977 = vmand %vm593, %vm913
        %vm978 = vmand %vm594, %vm914
        %vm979 = vmand %vm595, %vm915
        %vm980 = vmand %vm596, %vm916
        %vm981 = vmand %vm597, %vm917
        %vm982 = vmand %vm598, %vm918
        %vm983 = vmand %vm599, %vm919
        %vm984 = vmand %vm600, %vm920
        %vm985 = vmand %vm601, %vm921
        %vm986 = vmand %vm602, %vm922
        %vm987 = vmand %vm603, %vm923
        %vm988 = vmand %vm604, %vm924
        %vm989 = vmand %vm605, %vm925
        %vm990 = vmand %vm606, %vm926
        %vm991 = vmand %vm607, %vm927
        %vm992 = vmand %vm608, %vm928
        %vm993 = vmand %vm609, %vm929
        %vm994 = vmand %vm610, %vm930
        %vm995 = vmand %vm611, %vm931
        %vm996 = vmand %vm612, %vm932
        %vm997 = vmand %vm613, %vm933
        %vm998 = vmand %vm614, %vm934
        %vm999 = vmand %vm615, %vm935
        %vm1000 = vmand %vm616, %vm936
        %vm1001 = vmand %vm617, %vm937
        %vm1002 = vmand %vm618, %vm938
        %vm1003 = vmand %vm619, %vm939
        %vm1004 = vmand %vm620, %vm940
        %vm1005 = vmand %vm621, %vm941
        %vm1006 = vmand %vm622, %vm942
        %vm1007 = vmand %vm623, %vm943
        %vm1008 = vmand %vm624, %vm944
        %vm1009 = vmand %vm625, %vm945
        %vm1010 = vmand %vm626, %vm946
        %vm1011 = vmand %vm627, %vm947
        %vm1012 = vmand %vm628, %vm948
        %vm1013 = vmand %vm629, %vm949
        %vm1014 = vmand %vm630, %vm950
        %vm1015 = vmand %vm631, %vm951
        %vm1016 = vmand %vm632, %vm952
        %vm1017 = vmand %vm633, %vm953
        %vm1018 = vmand %vm634, %vm954
        %vm1019 = vmand %vm635, %vm955
        %vm1020 = vmand %vm636, %vm956
        %vm1021 = vmand %vm637, %vm957
        %vm1022 = vmand %vm638, %vm958
        %vm1023 = vmand %vm639, %vm959
        %vm1024 = vmand %vm640, %vm960
        %vm1025 = vmand %vm641, %vm961
        %vm1026 = vmand %vm642, %vm962
        %vm1027 = vmand %vm643, %vm963
        %vm1028 = vmand %vm644, %vm964
        %vm1029 = vmand %vm645, %vm965
        %vm1030 = vmand %vm646, %vm966
        %vm1031 = vmand %vm647, %vm967
        %vm1032 = vmand %vm648, %vm968
        %vm1033 = vmand %vm649, %vm969
        %vm1034 = vmand %vm650, %vm970
        %vm1035 = vmand %vm651, %vm971
        %vm1036 = vmand %vm652, %vm972
        %v1037 = vsel %vm973, 1, 0
        %v1038 = vsel %vm974, 1, 0
        %v1039 = vsel %vm975, 1, 0
        %v1040 = vsel %vm976, 1, 0
        %v1041 = vsel %vm977, 1, 0
        %v1042 = vsel %vm978, 1, 0
        %v1043 = vsel %vm979, 1, 0
        %v1044 = vsel %vm980, 1, 0
        %v1045 = vsel %vm981, 1, 0
        %v1046 = vsel %vm982, 1, 0
        %v1047 = vsel %vm983, 1, 0
        %v1048 = vsel %vm984, 1, 0
        %v1049 = vsel %vm985, 1, 0
        %v1050 = vsel %vm986, 1, 0
        %v1051 = vsel %vm987, 1, 0
        %v1052 = vsel %vm988, 1, 0
        %v1053 = vsel %vm989, 1, 0
        %v1054 = vsel %vm990, 1, 0
        %v1055 = vsel %vm991, 1, 0
        %v1056 = vsel %vm992, 1, 0
        %v1057 = vsel %vm993, 1, 0
        %v1058 = vsel %vm994, 1, 0
        %v1059 = vsel %vm995, 1, 0
        %v1060 = vsel %vm996, 1, 0
        %v1061 = vsel %vm997, 1, 0
        %v1062 = vsel %vm998, 1, 0
        %v1063 = vsel %vm999, 1, 0
        %v1064 = vsel %vm1000, 1, 0
        %v1065 = vsel %vm1001, 1, 0
        %v1066 = vsel %vm1002, 1, 0
        %v1067 = vsel %vm1003, 1, 0
        %v1068 = vsel %vm1004, 1, 0
        %v1069 = vsel %vm1005, 1, 0
        %v1070 = vsel %vm1006, 1, 0
        %v1071 = vsel %vm1007, 1, 0
        %v1072 = vsel %vm1008, 1, 0
        %v1073 = vsel %vm1009, 1, 0
        %v1074 = vsel %vm1010, 1, 0
        %v1075 = vsel %vm1011, 1, 0
        %v1076 = vsel %vm1012, 1, 0
        %v1077 = vsel %vm1013, 1, 0
        %v1078 = vsel %vm1014, 1, 0
        %v1079 = vsel %vm1015, 1, 0
        %v1080 = vsel %vm1016, 1, 0
        %v1081 = vsel %vm1017, 1, 0
        %v1082 = vsel %vm1018, 1, 0
        %v1083 = vsel %vm1019, 1, 0
        %v1084 = vsel %vm1020, 1, 0
        %v1085 = vsel %vm1021, 1, 0
        %v1086 = vsel %vm1022, 1, 0
        %v1087 = vsel %vm1023, 1, 0
        %v1088 = vsel %vm1024, 1, 0
        %v1089 = vsel %vm1025, 1, 0
        %v1090 = vsel %vm1026, 1, 0
        %v1091 = vsel %vm1027, 1, 0
        %v1092 = vsel %vm1028, 1, 0
        %v1093 = vsel %vm1029, 1, 0
        %v1094 = vsel %vm1030, 1, 0
        %v1095 = vsel %vm1031, 1, 0
        %v1096 = vsel %vm1032, 1, 0
        %v1097 = vsel %vm1033, 1, 0
        %v1098 = vsel %vm1034, 1, 0
        %v1099 = vsel %vm1035, 1, 0
        %v1100 = vsel %vm1036, 1, 0
        %v1101 = vcvt.s32.f32 %v1037
        %v1102 = vcvt.s32.f32 %v1038
        %v1103 = vcvt.s32.f32 %v1039
        %v1104 = vcvt.s32.f32 %v1040
        %v1105 = vcvt.s32.f32 %v1041
        %v1106 = vcvt.s32.f32 %v1042
        %v1107 = vcvt.s32.f32 %v1043
        %v1108 = vcvt.s32.f32 %v1044
        %v1109 = vcvt.s32.f32 %v1045
        %v1110 = vcvt.s32.f32 %v1046
        %v1111 = vcvt.s32.f32 %v1047
        %v1112 = vcvt.s32.f32 %v1048
        %v1113 = vcvt.s32.f32 %v1049
        %v1114 = vcvt.s32.f32 %v1050
        %v1115 = vcvt.s32.f32 %v1051
        %v1116 = vcvt.s32.f32 %v1052
        %v1117 = vcvt.s32.f32 %v1053
        %v1118 = vcvt.s32.f32 %v1054
        %v1119 = vcvt.s32.f32 %v1055
        %v1120 = vcvt.s32.f32 %v1056
        %v1121 = vcvt.s32.f32 %v1057
        %v1122 = vcvt.s32.f32 %v1058
        %v1123 = vcvt.s32.f32 %v1059
        %v1124 = vcvt.s32.f32 %v1060
        %v1125 = vcvt.s32.f32 %v1061
        %v1126 = vcvt.s32.f32 %v1062
        %v1127 = vcvt.s32.f32 %v1063
        %v1128 = vcvt.s32.f32 %v1064
        %v1129 = vcvt.s32.f32 %v1065
        %v1130 = vcvt.s32.f32 %v1066
        %v1131 = vcvt.s32.f32 %v1067
        %v1132 = vcvt.s32.f32 %v1068
        %v1133 = vcvt.s32.f32 %v1069
        %v1134 = vcvt.s32.f32 %v1070
        %v1135 = vcvt.s32.f32 %v1071
        %v1136 = vcvt.s32.f32 %v1072
        %v1137 = vcvt.s32.f32 %v1073
        %v1138 = vcvt.s32.f32 %v1074
        %v1139 = vcvt.s32.f32 %v1075
        %v1140 = vcvt.s32.f32 %v1076
        %v1141 = vcvt.s32.f32 %v1077
        %v1142 = vcvt.s32.f32 %v1078
        %v1143 = vcvt.s32.f32 %v1079
        %v1144 = vcvt.s32.f32 %v1080
        %v1145 = vcvt.s32.f32 %v1081
        %v1146 = vcvt.s32.f32 %v1082
        %v1147 = vcvt.s32.f32 %v1083
        %v1148 = vcvt.s32.f32 %v1084
        %v1149 = vcvt.s32.f32 %v1085
        %v1150 = vcvt.s32.f32 %v1086
        %v1151 = vcvt.s32.f32 %v1087
        %v1152 = vcvt.s32.f32 %v1088
        %v1153 = vcvt.s32.f32 %v1089
        %v1154 = vcvt.s32.f32 %v1090
        %v1155 = vcvt.s32.f32 %v1091
        %v1156 = vcvt.s32.f32 %v1092
        %v1157 = vcvt.s32.f32 %v1093
        %v1158 = vcvt.s32.f32 %v1094
        %v1159 = vcvt.s32.f32 %v1095
        %v1160 = vcvt.s32.f32 %v1096
        %v1161 = vcvt.s32.f32 %v1097
        %v1162 = vcvt.s32.f32 %v1098
        %v1163 = vcvt.s32.f32 %v1099
        %v1164 = vcvt.s32.f32 %v1100
        %v1165 = vmul.f32 %v1101, 0.020408163
        %v1166 = vmul.f32 %v1102, 0.020408163
        %v1167 = vmul.f32 %v1103, 0.020408163
        %v1168 = vmul.f32 %v1104, 0.020408163
        %v1169 = vmul.f32 %v1105, 0.020408163
        %v1170 = vmul.f32 %v1106, 0.020408163
        %v1171 = vmul.f32 %v1107, 0.020408163
        %v1172 = vmul.f32 %v1108, 0.020408163
        %v1173 = vmul.f32 %v1109, 0.020408163
        %v1174 = vmul.f32 %v1110, 0.020408163
        %v1175 = vmul.f32 %v1111, 0.020408163
        %v1176 = vmul.f32 %v1112, 0.020408163
        %v1177 = vmul.f32 %v1113, 0.020408163
        %v1178 = vmul.f32 %v1114, 0.020408163
        %v1179 = vmul.f32 %v1115, 0.020408163
        %v1180 = vmul.f32 %v1116, 0.020408163
        %v1181 = vmul.f32 %v1117, 0.020408163
        %v1182 = vmul.f32 %v1118, 0.020408163
        %v1183 = vmul.f32 %v1119, 0.020408163
        %v1184 = vmul.f32 %v1120, 0.020408163
        %v1185 = vmul.f32 %v1121, 0.020408163
        %v1186 = vmul.f32 %v1122, 0.020408163
        %v1187 = vmul.f32 %v1123, 0.020408163
        %v1188 = vmul.f32 %v1124, 0.020408163
        %v1189 = vmul.f32 %v1125, 0.020408163
        %v1190 = vmul.f32 %v1126, 0.020408163
        %v1191 = vmul.f32 %v1127, 0.020408163
        %v1192 = vmul.f32 %v1128, 0.020408163
        %v1193 = vmul.f32 %v1129, 0.020408163
        %v1194 = vmul.f32 %v1130, 0.020408163
        %v1195 = vmul.f32 %v1131, 0.020408163
        %v1196 = vmul.f32 %v1132, 0.020408163
        %v1197 = vmul.f32 %v1133, 0.020408163
        %v1198 = vmul.f32 %v1134, 0.020408163
        %v1199 = vmul.f32 %v1135, 0.020408163
        %v1200 = vmul.f32 %v1136, 0.020408163
        %v1201 = vmul.f32 %v1137, 0.020408163
        %v1202 = vmul.f32 %v1138, 0.020408163
        %v1203 = vmul.f32 %v1139, 0.020408163
        %v1204 = vmul.f32 %v1140, 0.020408163
        %v1205 = vmul.f32 %v1141, 0.020408163
        %v1206 = vmul.f32 %v1142, 0.020408163
        %v1207 = vmul.f32 %v1143, 0.020408163
        %v1208 = vmul.f32 %v1144, 0.020408163
        %v1209 = vmul.f32 %v1145, 0.020408163
        %v1210 = vmul.f32 %v1146, 0.020408163
        %v1211 = vmul.f32 %v1147, 0.020408163
        %v1212 = vmul.f32 %v1148, 0.020408163
        %v1213 = vmul.f32 %v1149, 0.020408163
        %v1214 = vmul.f32 %v1150, 0.020408163
        %v1215 = vmul.f32 %v1151, 0.020408163
        %v1216 = vmul.f32 %v1152, 0.020408163
        %v1217 = vmul.f32 %v1153, 0.020408163
        %v1218 = vmul.f32 %v1154, 0.020408163
        %v1219 = vmul.f32 %v1155, 0.020408163
        %v1220 = vmul.f32 %v1156, 0.020408163
        %v1221 = vmul.f32 %v1157, 0.020408163
        %v1222 = vmul.f32 %v1158, 0.020408163
        %v1223 = vmul.f32 %v1159, 0.020408163
        %v1224 = vmul.f32 %v1160, 0.020408163
        %v1225 = vmul.f32 %v1161, 0.020408163
        %v1226 = vmul.f32 %v1162, 0.020408163
        %v1227 = vmul.f32 %v1163, 0.020408163
        %v1228 = vmul.f32 %v1164, 0.020408163
        %v1230 = vcombine.high %v228, %v228
        %1232 = vmatprep.subr.mxu0 %v1166
        %1233 = vmatpush1.msra.mxu0 %v1165
        %1234 = vmatprep.subr.mxu0 %v1168
        %1235 = vmatpush1.msra.mxu0 %v1167
        %1236 = vmatprep.subr.mxu0 %v1170
        %1237 = vmatpush1.msra.mxu0 %v1169
        %1238 = vmatprep.subr.mxu0 %v1172
        %1239 = vmatpush1.msra.mxu0 %v1171
        %1240 = vmatprep.subr.mxu0 %v1174
        %1241 = vmatpush1.msra.mxu0 %v1173
        %1242 = vmatprep.subr.mxu0 %v1176
        %1243 = vmatpush1.msra.mxu0 %v1175
        %1244 = vmatprep.subr.mxu0 %v1178
        %1245 = vmatpush1.msra.mxu0 %v1177
        %1246 = vmatprep.subr.mxu0 %v1180
        %1247 = vmatpush1.msra.mxu0 %v1179
        %1248 = vmatprep.subr.mxu0 %v1182
        %1249 = vmatpush1.msra.mxu0 %v1181
        %1250 = vmatprep.subr.mxu0 %v1184
        %1251 = vmatpush1.msra.mxu0 %v1183
        %1252 = vmatprep.subr.mxu0 %v1186
        %1253 = vmatpush1.msra.mxu0 %v1185
        %1254 = vmatprep.subr.mxu0 %v1188
        %1255 = vmatpush1.msra.mxu0 %v1187
        %1256 = vmatprep.subr.mxu0 %v1190
        %1257 = vmatpush1.msra.mxu0 %v1189
        %1258 = vmatprep.subr.mxu0 %v1192
        %1259 = vmatpush1.msra.mxu0 %v1191
        %1260 = vmatprep.subr.mxu0 %v1194
        %1261 = vmatpush1.msra.mxu0 %v1193
        %1262 = vmatprep.subr.mxu0 %v1196
        %1263 = vmatpush1.msra.mxu0 %v1195
        %1264 = vmatprep.subr.mxu0 %v1198
        %1265 = vmatpush1.msra.mxu0 %v1197
        %1266 = vmatprep.subr.mxu0 %v1200
        %1267 = vmatpush1.msra.mxu0 %v1199
        %1268 = vmatprep.subr.mxu0 %v1202
        %1269 = vmatpush1.msra.mxu0 %v1201
        %1270 = vmatprep.subr.mxu0 %v1204
        %1271 = vmatpush1.msra.mxu0 %v1203
        %1272 = vmatprep.subr.mxu0 %v1206
        %1273 = vmatpush1.msra.mxu0 %v1205
        %1274 = vmatprep.subr.mxu0 %v1208
        %1275 = vmatpush1.msra.mxu0 %v1207
        %1276 = vmatprep.subr.mxu0 %v1210
        %1277 = vmatpush1.msra.mxu0 %v1209
        %1278 = vmatprep.subr.mxu0 %v1212
        %1279 = vmatpush1.msra.mxu0 %v1211
        %1280 = vmatprep.subr.mxu0 %v1214
        %1281 = vmatpush1.msra.mxu0 %v1213
        %1282 = vmatprep.subr.mxu0 %v1216
        %1283 = vmatpush1.msra.mxu0 %v1215
        %1284 = vmatprep.subr.mxu0 %v1218
        %1285 = vmatpush1.msra.mxu0 %v1217
        %1286 = vmatprep.subr.mxu0 %v1220
        %1287 = vmatpush1.msra.mxu0 %v1219
        %1288 = vmatprep.subr.mxu0 %v1222
        %1289 = vmatpush1.msra.mxu0 %v1221
        %1290 = vmatprep.subr.mxu0 %v1224
        %1291 = vmatpush1.msra.mxu0 %v1223
        %1292 = vmatprep.subr.mxu0 %v1226
        %1293 = vmatpush1.msra.mxu0 %v1225
        %1294 = vmatprep.subr.mxu0 %v1228
        %1295 = vmatpush1.msra.mxu0 %v1227
        %1296 = vmatprep.mubr.f32.mxu0 %v1230
        %1297 = vmatmul.mubr.f32.gmra.mrb[0].mxu0 %v228
        %v1298 = vpop.f32.mrb[0].mxu0
        %v1299 = vadd.f32 0.0, %v1298
        %v1300 = vpop.f32.mrb[0].mxu0
        %v1301 = vadd.f32 0.0, %v1300
        %1302 = vdwg.mxu0
        %v1303 = vld [vmem:[%s195] sm:$0x77]
        %v1304 = vsub.f32 %v1303, 0.5
        %v1305 = vmul.f32 %v1304, 0.003921569
        %v1306 = vadd.f32 %v201, %v1305
        %v1309 = vcombine.low %v1299, %v1301
        %v1311 = vsub.f32 %v1306, %v1309
        %v1312 = vmul.f32 %v1311, %v1311
        %v1314 = vcombine.high %v1312, %v1312
        %v1316 = vsel %vm205, %v1312, 0.0
        %v1317 = vsel %vm205, %v1314, 0.0
        %v1318 = vadd.f32 %v1316, %v1317
        %1319 = vadd.xlane.f32.xlu0 %v1318
        %v1320 = vpop.xlane.xlu0 %1319
        %v1321 = vsel %vm205, %v1320, 0.0
        %v1322 = vrot.slane %v1321, 4
        %v1323 = vadd.f32 %v1321, %v1322
        %v1324 = vrot.slane %v1323, 2
        %v1325 = vadd.f32 %v1323, %v1324
        %v1326 = vrot.slane %v1325, 1
        %v1327 = vadd.f32 %v1325, %v1326
        %v1328 = vadd.f32 %v1327, 1411.4896
        %v1329 = vmul.f32 %v1328, -0.5
        %v1330 = vadd.f32 %v1329, -1418.5635
        %v1331 = vsub.f32 0.0, %v1330
        %v1332 = vmul.f32 %v1331, 0.0056355274
        %1333 = vst [vmem:[%s200] sm:$0x77] %v1306
        %1334 = vst [vmem:[%s185] sm:$0x1] %v1332
        %p1335 = scmp.lt.s32.totalorder %s18, 1
        %s1336 = scalar_select %p1335, %s18, 1
        %s1337 = smul.addr %s1336, 2
        %s1338 = smul.addr %s1337, 4
        %s1339 = scalar_lea.vmem %s2, %s1338
        %s1340 = sand.u32 %s104, 1
        %s1341 = scalar_lea.sflag [#allocation3], %s1340
        %s1342 = sand.u32 %s104, 1
        %s1343 = scalar_lea.vmem [#allocation2], %s1342
        // Predicated region
        $region29: #{tpu_custom_call.1} parent=27 // pred_check
          %p1344 = pneg %p88
        $region30: #{tpu_custom_call.1} parent=27 // pred_check_branch
          %1346 = sbr.rel (%p1344) target = $region32
        $region31: #{tpu_custom_call.1} parent=27 // pred_region
          _
        $region32: #{tpu_custom_call.1} parent=27 // pred_fallthru
          _
        // Predicated region
        $region33: #{tpu_custom_call.1} parent=27 // pred_check
          %p1347 = pneg %p114
        $region34: #{tpu_custom_call.1} parent=27 // pred_check_branch
          %1349 = sbr.rel (%p1347) target = $region36
        $region35: #{tpu_custom_call.1} parent=27 // pred_region
          %s1351 = ssub.s32 16, 16
          %1352 = vsyncadd %s1341, %s1351
          %s1353 = smul.addr %s18, 16
          %s1354 = scalar_lea.hbm %s3, %s1353
          %s1356 = sshll.u32 %s1343, 4
          %s1357 = int_to_ptr.vmem [resolvable:$true] %s1356
          %1359 = dma.vmem_to_hbm [thread:$0]  %s1357, 16, %s1354, %s1341
        $region36: #{tpu_custom_call.1} parent=27 // pred_fallthru
          _
      $region28: #{tpu_custom_call.1} parent=5 // pred_fallthru
        _
      %p1360 = scmp.le.s32.totalorder 2, %s13
      // Predicated region
      $region37: #{tpu_custom_call.1} parent=5 // pred_check
        %p1361 = pneg %p1360
      $region38: #{tpu_custom_call.1} parent=5 // pred_check_branch
        %1363 = sbr.rel (%p1361) target = $region40
      $region39: #{tpu_custom_call.1} parent=5 // pred_region
        %s1364 = ssub.s32 %s13, 2
        // Predicated region
        $region41: #{tpu_custom_call.1} parent=39 // pred_check
          %p1365 = pneg %p94
        $region42: #{tpu_custom_call.1} parent=39 // pred_check_branch
          %1367 = sbr.rel (%p1365) target = $region44
        $region43: #{tpu_custom_call.1} parent=39 // pred_region
          %p1368 = scmp.lt.s32.totalorder %s19, 1
          %s1369 = scalar_select %p1368, %s19, 1
          %s1370 = smul.addr %s1369, 2
          %s1371 = smul.addr %s1370, 4
          %s1372 = scalar_lea.vmem %s2, %s1371
        $region44: #{tpu_custom_call.1} parent=39 // pred_fallthru
          _
        // Predicated region
        $region45: #{tpu_custom_call.1} parent=39 // pred_check
          %p1373 = pneg %p120
        $region46: #{tpu_custom_call.1} parent=39 // pred_check_branch
          %1375 = sbr.rel (%p1373) target = $region48
        $region47: #{tpu_custom_call.1} parent=39 // pred_region
          %s1376 = sand.u32 %s105, 1
          %s1377 = scalar_lea.sflag [#allocation3], %s1376
          %s1378 = sand.u32 %s105, 1
          %s1379 = scalar_lea.vmem [#allocation2], %s1378
          %1380 = dma.done %s1377, 16
        $region48: #{tpu_custom_call.1} parent=39 // pred_fallthru
          _
      $region40: #{tpu_custom_call.1} parent=5 // pred_fallthru
        _
    $region6: #{tpu_custom_call.1} parent=1 // loop_footer
      %s17 = sadd.s32 1, %s13
    $region7: #{tpu_custom_call.1} parent=1 // loop_footer_branch
      %12 = sbr.rel target = $region3
    $region8: #{tpu_custom_call.1} parent=1 // loop_exit
      _
    %1381 = vsyncpa [#allocation3], 1
    %s1382 = scalar_lea.sflag [#allocation3], 1
    %1383 = vsyncpa %s1382, 1

</llo_original>
